<compile_context>
chip_gen: v7x
topology: tpu7x:2x2x1
jax: 0.10.0
libtpu: 0.0.40
codegen_flags: <defaults>
</compile_context>

<pallas_src>
import functools

import numpy as np
import jax
import jax.numpy as jnp
from jax.experimental import pallas as pl
from jax.experimental.pallas import tpu as pltpu

PAD_LOGIT = -1.0e4  # padded masks: sigmoid==0, BCE==0, dice==0 exactly


# ----------------------------------------------------------------------------
# Pallas kernel: BCE + dice partial sums for one block of M masks
# ----------------------------------------------------------------------------
def _mask_loss_kernel(src_ref, tgt_ref, wh_ref, wwt_ref, gind_ref,
                      out_ref, mid_ref):
    """One grid step = one block of M masks.

    src_ref : [M, h, w]   bf16 predicted mask logits (PAD_LOGIT for pad masks)
    tgt_ref : [H, M*W]    int8 binary targets, mask index folded into lanes
    wh_ref  : [H, h]      bf16 height bilinear-interp matrix (H = 4h)
    wwt_ref : [w, W]      bf16 width bilinear-interp matrix, transposed (W = 4w)
    gind_ref: [M*W, M]    f32 lane -> mask indicator (per-mask segment sums)
    out_ref : [1, 8, 128] f32; row0 = sum BCE, row1 = sum dice-loss (this block)
    mid_ref : [h, M*W]    f32 VMEM scratch (width-upsampled, low-res rows)
    """
    M, h, w = src_ref.shape
    H = wh_ref.shape[0]
    Wup = wwt_ref.shape[1]
    MW = M * Wup

    # ---- width pass: per-mask dense matmul (no block-diagonal redundancy) ----
    for m in range(M):
        mid_ref[:, m * Wup:(m + 1) * Wup] = jnp.dot(
            src_ref[m], wwt_ref[...], preferred_element_type=jnp.float32)
    mid_bf = mid_ref[...].astype(jnp.bfloat16)                     # [h, M*W]

    # ---- height pass + elementwise BCE/sigmoid/dice stats, chunked over H ----
    HC = 256 if (H > 256 and H % 256 == 0) else H
    bce_sum = jnp.float32(0.0)
    inter_cols = jnp.zeros((1, MW), jnp.float32)
    denom_cols = jnp.zeros((1, MW), jnp.float32)
    for c in range(0, H, HC):
        up = jnp.dot(wh_ref[c:c + HC, :], mid_bf,
                     preferred_element_type=jnp.float32)           # [HC, M*W]
        tgt = tgt_ref[c:c + HC, :].astype(jnp.float32)             # [HC, M*W]

        # stable BCE-with-logits and sigmoid sharing a single exp per element
        e = jnp.exp(-jnp.abs(up))
        bce = jnp.maximum(up, 0.0) - up * tgt + jnp.log(1.0 + e)
        r = pl.reciprocal(1.0 + e, approx=True)
        sig = jnp.where(up >= 0.0, r, e * r)

        bce_sum = bce_sum + jnp.sum(bce)                           # pads -> 0
        inter_cols = inter_cols + jnp.sum(sig * tgt, axis=0, keepdims=True)
        # tgt column-sum is folded into the same reduce as sig (one less pass)
        denom_cols = denom_cols + jnp.sum(sig + tgt, axis=0, keepdims=True)

    # ---- per-mask segment sums via tiny indicator matmuls, then dice ---------
    inter = jnp.dot(inter_cols, gind_ref[...], preferred_element_type=jnp.float32)
    denom = jnp.dot(denom_cols, gind_ref[...], preferred_element_type=jnp.float32)
    dice = 1.0 - (2.0 * inter + 1.0) / (denom + 1.0)               # [1, M]
    dice_sum = jnp.sum(dice)                                       # pads -> 0

    row = jax.lax.broadcasted_iota(jnp.int32, (8, 128), 0)
    out_ref[...] = (jnp.where(row == 0, bce_sum, 0.0)
                    + jnp.where(row == 1, dice_sum, 0.0))[None]


@functools.partial(jax.jit, static_argnames=("mask_block",))
def _device_loss(logits_flat, onehot, weight, src_blk, tgt_cols,
                 wh, wwt, gind, num_masks, *, mask_block):
    """One pallas_call for the mask losses + tiny XLA epilogue (CE, reductions)."""
    M = mask_block
    h = src_blk.shape[1]
    w = src_blk.shape[2]
    H = wh.shape[0]
    Wup = wwt.shape[1]
    G = src_blk.shape[0] // M

    mask_out = pl.pallas_call(
        _mask_loss_kernel,
        out_shape=jax.ShapeDtypeStruct((G, 8, 128), jnp.float32),
        grid=(G,),
        in_specs=[
            pl.BlockSpec((M, h, w), lambda g: (g, 0, 0)),           # src (bf16)
            pl.BlockSpec((H, M * Wup), lambda g: (0, g)),           # tgt (int8)
            pl.BlockSpec((H, h), lambda g: (0, 0)),                 # wh  (bf16)
            pl.BlockSpec((w, Wup), lambda g: (0, 0)),               # wwt (bf16)
            pl.BlockSpec((M * Wup, M), lambda g: (0, 0)),           # gind (f32)
        ],
        out_specs=pl.BlockSpec((1, 8, 128), lambda g: (g, 0, 0)),
        scratch_shapes=[pltpu.VMEM((h, M * Wup), jnp.float32)],
        compiler_params=pltpu.CompilerParams(
            dimension_semantics=("parallel",),
            # 48 MiB: raised vs 32 MiB for v5e/v6e, still safe under v7x's 64 MiB
            vmem_limit_bytes=48 * 1024 * 1024),
    )(src_blk, tgt_cols, wh, wwt, gind)

    # ---- weighted softmax cross-entropy: tiny [B*Q, K+1] problem in plain XLA
    x = logits_flat
    mx = jnp.max(x, axis=-1, keepdims=True)
    lse = mx + jnp.log(jnp.sum(jnp.exp(x - mx), axis=-1, keepdims=True))
    nll = lse - jnp.sum(onehot * x, axis=-1, keepdims=True)         # [R, 1]
    wr = jnp.sum(onehot * weight, axis=-1, keepdims=True)           # [R, 1]
    loss_ce = jnp.sum(wr * nll) / jnp.sum(wr)

    loss_mask = jnp.sum(mask_out[:, 0, 0]) / H / num_masks
    loss_dice = jnp.sum(mask_out[:, 1, 0]) / num_masks
    return (loss_ce + loss_mask + loss_dice) / 3.0


# ----------------------------------------------------------------------------
# Host-side glue (numpy): preprocessing, Hungarian matching, layout packing
# ----------------------------------------------------------------------------
def _hungarian(cost):
    """Minimal linear_sum_assignment (Kuhn-Munkres with potentials)."""
    cost = np.asarray(cost, dtype=np.float64)
    transposed = False
    if cost.shape[0] > cost.shape[1]:
        cost = cost.T
        transposed = True
    n, m = cost.shape
    INF = float("inf")
    u = [0.0] * (n + 1)
    v = [0.0] * (m + 1)
    p = [0] * (m + 1)
    way = [0] * (m + 1)
    for i in range(1, n + 1):
        p[0] = i
        j0 = 0
        minv = [INF] * (m + 1)
        used = [False] * (m + 1)
        while True:
            used[j0] = True
            i0 = p[j0]
            delta = INF
            j1 = 0
            for j in range(1, m + 1):
                if not used[j]:
                    cur = cost[i0 - 1, j - 1] - u[i0] - v[j]
                    if cur < minv[j]:
                        minv[j] = cur
                        way[j] = j0
                    if minv[j] < delta:
                        delta = minv[j]
                        j1 = j
            for j in range(m + 1):
                if used[j]:
                    u[p[j]] += delta
                    v[j] -= delta
                else:
                    minv[j] -= delta
            j0 = j1
            if p[j0] == 0:
                break
        while True:
            j1 = way[j0]
            p[j0] = p[j1]
            j0 = j1
            if j0 == 0:
                break
    rows, cols = [], []
    for j in range(1, m + 1):
        if p[j] != 0:
            rows.append(p[j] - 1)
            cols.append(j - 1)
    rows = np.asarray(rows, dtype=np.int64)
    cols = np.asarray(cols, dtype=np.int64)
    if transposed:
        rows, cols = cols, rows
    order = np.argsort(rows, kind="stable")
    return rows[order], cols[order]


def bilinear_upsample_matrix(in_size, scale):
    """Interpolation matrix for F.interpolate(mode='bilinear', align_corners=False)."""
    out_size = in_size * scale
    dst = np.arange(out_size, dtype=np.float64)
    src = (dst + 0.5) / scale - 0.5
    src = np.maximum(src, 0.0)
    i0 = np.minimum(np.floor(src).astype(np.int64), in_size - 1)
    i1 = np.minimum(i0 + 1, in_size - 1)
    l1 = src - i0
    l0 = 1.0 - l1
    M = np.zeros((out_size, in_size), dtype=np.float64)
    M[np.arange(out_size), i0] += l0
    M[np.arange(out_size), i1] += l1
    return M.astype(np.float32)


def _preprocess_and_match(pred_logits_np, targets_np, num_classes):
    """preprocess_gt_semantic + MaskHungarianMatcher (num_points=0 defaults)."""
    B, C, H, W = targets_np.shape
    tgt_labels, tgt_masks = [], []
    for b in range(B):
        present = [c for c in range(C) if targets_np[b, c].sum() > 0]
        if len(present) == 0:
            masks_b = np.zeros((1, H, W), dtype=np.float32)
            labels_b = np.array([19], dtype=np.int64)  # hardcoded 19 as in reference
        else:
            masks_b = targets_np[b, present].astype(np.float32)
            labels_b = np.array(present, dtype=np.int64)
        tgt_labels.append(labels_b)
        tgt_masks.append(masks_b)

    indices = []
    for b in range(B):
        # MaskHungarianMatcher() defaults num_points=0 => mask/dice costs are
        # identically zero; matching cost reduces to -softmax(logits)[:, tgt_ids].
        z = pred_logits_np[b].astype(np.float64)
        z = z - z.max(axis=-1, keepdims=True)
        prob = np.exp(z)
        prob /= prob.sum(axis=-1, keepdims=True)
        cost = -prob[:, tgt_labels[b]]
        indices.append(_hungarian(cost))

    # TODO(synk): torch.distributed.all_reduce(num_masks) skipped (single host).
    num_masks = float(sum(len(l) for l in tgt_labels))
    num_masks = max(num_masks, 1.0)
    return tgt_labels, tgt_masks, indices, num_masks


def _choose_mask_block(w):
    """Smallest M with (M * 4w) % 128 == 0: minimum lane-aligned block (less padding,
    more parallel grid blocks for v7x's two TensorCores)."""
    return max(1, 32 // int(np.gcd(int(w), 32)))


# ----------------------------------------------------------------------------
# Full forward (Pallas) and a numpy reference
# ----------------------------------------------------------------------------
def mask2former_loss_pallas(pred_logits, pred_masks, targets, num_classes=19):
    pred_logits_np = np.asarray(pred_logits, dtype=np.float32)
    pred_masks_np = np.asarray(pred_masks, dtype=np.float32)
    targets_np = np.asarray(targets, dtype=np.float32)

    tgt_labels, tgt_masks, indices, num_masks = _preprocess_and_match(
        pred_logits_np, targets_np, num_classes)

    B, Q, K1 = pred_logits_np.shape
    assert K1 == num_classes + 1

    # ---- loss_labels inputs (CE itself runs as plain XLA inside the jit) -----
    target_classes = np.full((B, Q), num_classes, dtype=np.int64)
    for b, (src, tj) in enumerate(indices):
        target_classes[b, src] = tgt_labels[b][tj]
    onehot = (target_classes.reshape(-1)[:, None]
              == np.arange(K1)[None, :]).astype(np.float32)
    logits_flat = pred_logits_np.reshape(-1, K1)
    empty_weight = np.ones((1, K1), np.float32)  # registered buffer 'empty_weight'

    # ---- loss_masks inputs: gather matched masks, pad, pack for the kernel ---
    src_list, tgt_list = [], []
    for b, (src, tj) in enumerate(indices):
        src_list.append(pred_masks_np[b, src])
        tgt_list.append(tgt_masks[b][tj])
    src_sel = np.concatenate(src_list, 0)                 # [N, h, w]
    tgt_sel = np.concatenate(tgt_list, 0)                 # [N, H, W]
    N, h_, w_ = src_sel.shape
    Hup, Wup = 4 * h_, 4 * w_
    assert tgt_sel.shape[1:] == (Hup, Wup)

    M = _choose_mask_block(w_)
    N_pad = -(-N // M) * M
    G = N_pad // M
    # (8,128) BlockSpec rule must hold whenever G > 1 (review correctness concern)
    assert (M * Wup) % 128 == 0 or G == 1, (M, Wup, G)

    src_blk = np.full((N_pad, h_, w_), PAD_LOGIT, np.float32)
    src_blk[:N] = src_sel                                          # [N_pad, h, w]

    tgt_pad = np.zeros((N_pad, Hup, Wup), np.int8)
    tgt_pad[:N] = tgt_sel.astype(np.int8)                          # binary 0/1
    # fold mask index into the lane dimension: [n, y, x] -> [y, n*x]
    tgt_cols = np.ascontiguousarray(
        tgt_pad.transpose(1, 0, 2).reshape(Hup, N_pad * Wup))      # int8

    wh = bilinear_upsample_matrix(h_, 4)                           # [H, h]
    wwt = np.ascontiguousarray(bilinear_upsample_matrix(w_, 4).T)  # [w, W]
    gind = (np.arange(M * Wup)[:, None] // Wup
            == np.arange(M)[None, :]).astype(np.float32)           # [M*W, M]

    # bf16 MXU operands (bilinear weights are multiples of 1/8 -> exact in bf16)
    src_dev = jnp.asarray(src_blk).astype(jnp.bfloat16)
    wh_dev = jnp.asarray(wh).astype(jnp.bfloat16)
    wwt_dev = jnp.asarray(wwt).astype(jnp.bfloat16)
    tgt_dev = jnp.asarray(tgt_cols)                                # int8 stream
    gind_dev = jnp.asarray(gind)

    # TODO(synk): 'aux_outputs' branch not exercised in this synthetic setup.
    loss = _device_loss(
        jnp.asarray(logits_flat), jnp.asarray(onehot), jnp.asarray(empty_weight),
        src_dev, tgt_dev, wh_dev, wwt_dev, gind_dev,
        jnp.float32(num_masks), mask_block=M)
    return loss


def mask2former_loss_ref(pred_logits, pred_masks, targets, num_classes=19):
    """Pure numpy reference (same semantics, float64)."""
    pred_logits = np.asarray(pred_logits, np.float64)
    pred_masks = np.asarray(pred_masks, np.float64)
    targets = np.asarray(targets, np.float64)
    tgt_labels, tgt_masks, indices, num_masks = _preprocess_and_match(
        pred_logits.astype(np.float32), targets.astype(np.float32), num_classes)

    B, Q, K1 = pred_logits.shape
    target_classes = np.full((B, Q), num_classes, dtype=np.int64)
    for b, (src, tj) in enumerate(indices):
        target_classes[b, src] = tgt_labels[b][tj]
    z = pred_logits - pred_logits.max(-1, keepdims=True)
    logp = z - np.log(np.exp(z).sum(-1, keepdims=True))
    nll = -np.take_along_axis(logp, target_classes[..., None], -1)[..., 0]
    wr = np.ones(K1)[target_classes]
    loss_ce = (wr * nll).sum() / wr.sum()

    src_list, tgt_list = [], []
    for b, (src, tj) in enumerate(indices):
        src_list.append(pred_masks[b, src])
        tgt_list.append(tgt_masks[b][tj])
    src_m = np.concatenate(src_list, 0)
    tgt_m = np.concatenate(tgt_list, 0).astype(np.float64)
    h_, w_ = src_m.shape[1:]
    wh = bilinear_upsample_matrix(h_, 4).astype(np.float64)
    ww = bilinear_upsample_matrix(w_, 4).astype(np.float64)
    up = np.einsum("Hh,nhw,Ww->nHW", wh, src_m, ww)
    bce = np.maximum(up, 0.0) - up * tgt_m + np.log1p(np.exp(-np.abs(up)))
    loss_mask = bce.sum() / (4 * h_) / num_masks
    sig = 1.0 / (1.0 + np.exp(-up))
    inter = (sig * tgt_m).sum(axis=(1, 2))
    dice = 1.0 - (2.0 * inter + 1.0) / (sig.sum(axis=(1, 2)) + tgt_m.sum(axis=(1, 2)) + 1.0)
    loss_dice = dice.sum() / num_masks
    return float((loss_ce + loss_mask + loss_dice) / 3.0)


# ----------------------------------------------------------------------------
if __name__ == "__main__":
    key = jax.random.PRNGKey(0)
    k1, k2, k3 = jax.random.split(key, 3)

    B, Q, NUM_CLASSES = 2, 8, 19
    h, w = 8, 8
    H, W = 4 * h, 4 * w

    pred_logits = jax.random.normal(k1, (B, Q, NUM_CLASSES + 1), jnp.float32)
    pred_masks = jax.random.normal(k2, (B, Q, h, w), jnp.float32)
    # dense semantic GT: only classes 0..3 present -> one-hot over 19 channels
    label_map = jax.random.randint(k3, (B, H, W), 0, 4)
    targets = (label_map[:, None, :, :]
               == jnp.arange(NUM_CLASSES)[None, :, None, None]).astype(jnp.float32)

    loss = mask2former_loss_pallas(pred_logits, pred_masks, targets, NUM_CLASSES)
    loss = jax.block_until_ready(loss)
    loss_val = float(loss)

    ref = mask2former_loss_ref(np.asarray(pred_logits), np.asarray(pred_masks),
                               np.asarray(targets), NUM_CLASSES)

    assert np.isfinite(loss_val), loss_val
    # tolerance accounts for bf16 MXU operands + approx-reciprocal sigmoid
    assert abs(loss_val - ref) <= 3e-3 * max(1.0, abs(ref)), (loss_val, ref)
    print("KERNEL_OK")
</pallas_src>

<mosaic_0001>
module attributes {stable_mosaic.version = 11 : i64} {
  func.func @_mask_loss_kernel(%arg0: i32, %arg1: memref<4x8x8xbf16, #tpu.memory_space<vmem>>, %arg2: memref<32x128xi8, #tpu.memory_space<vmem>>, %arg3: memref<32x8xbf16, #tpu.memory_space<vmem>>, %arg4: memref<8x32xbf16, #tpu.memory_space<vmem>>, %arg5: memref<128x4xf32, #tpu.memory_space<vmem>>, %arg6: memref<1x8x128xf32, #tpu.memory_space<vmem>>, %arg7: memref<8x128xf32, #tpu.memory_space<vmem>>) attributes {dimension_semantics = [#tpu.dimension_semantics<parallel>], iteration_bounds = array<i64: 2>, scalar_prefetch = 0 : i64, scratch_operands = 1 : i64, tpu.core_type = #tpu.core_type<tc>, window_params = [{transform_indices = @transform_0, window_bounds = array<i64: 4, 8, 8>}, {transform_indices = @transform_1, window_bounds = array<i64: 32, 128>}, {pipeline_mode = #tpu.pipeline_mode<synchronous>, transform_indices = @transform_2, window_bounds = array<i64: 32, 8>}, {pipeline_mode = #tpu.pipeline_mode<synchronous>, transform_indices = @transform_3, window_bounds = array<i64: 8, 32>}, {pipeline_mode = #tpu.pipeline_mode<synchronous>, transform_indices = @transform_4, window_bounds = array<i64: 128, 4>}, {transform_indices = @transform_5, window_bounds = array<i64: 1, 8, 128>}]} {
    %c0 = arith.constant 0 : index
    %c0_0 = arith.constant 0 : index
    %c0_1 = arith.constant 0 : index
    %0 = vector.load %arg1[%c0, %c0_0, %c0_1] : memref<4x8x8xbf16, #tpu.memory_space<vmem>>, vector<1x8x8xbf16>
    %1 = vector.shape_cast %0 : vector<1x8x8xbf16> to vector<8x8xbf16>
    %c0_2 = arith.constant 0 : index
    %c0_3 = arith.constant 0 : index
    %2 = vector.load %arg4[%c0_2, %c0_3] : memref<8x32xbf16, #tpu.memory_space<vmem>>, vector<8x32xbf16>
    %cst = arith.constant dense<0.000000e+00> : vector<8x32xf32>
    %3 = tpu.matmul %1, %2, %cst {dimension_numbers = #tpu.dot_dimension_numbers<[1], [0], [0], [1], [0, 0, 1, 1], [], []>} : vector<8x8xbf16>, vector<8x32xbf16>, vector<8x32xf32> -> vector<8x32xf32>
    %c0_4 = arith.constant 0 : index
    %c0_5 = arith.constant 0 : index
    %4 = vector.load %arg7[%c0_4, %c0_5] : memref<8x128xf32, #tpu.memory_space<vmem>>, vector<8x32xf32>
    tpu.vector_store %arg7[%c0_4, %c0_5], %3 {strides = array<i32>} : memref<8x128xf32, #tpu.memory_space<vmem>>, vector<8x32xf32>,
    %c1 = arith.constant 1 : index
    %c0_6 = arith.constant 0 : index
    %c0_7 = arith.constant 0 : index
    %5 = vector.load %arg1[%c1, %c0_6, %c0_7] : memref<4x8x8xbf16, #tpu.memory_space<vmem>>, vector<1x8x8xbf16>
    %6 = vector.shape_cast %5 : vector<1x8x8xbf16> to vector<8x8xbf16>
    %c0_8 = arith.constant 0 : index
    %c0_9 = arith.constant 0 : index
    %7 = vector.load %arg4[%c0_8, %c0_9] : memref<8x32xbf16, #tpu.memory_space<vmem>>, vector<8x32xbf16>
    %cst_10 = arith.constant dense<0.000000e+00> : vector<8x32xf32>
    %8 = tpu.matmul %6, %7, %cst_10 {dimension_numbers = #tpu.dot_dimension_numbers<[1], [0], [0], [1], [0, 0, 1, 1], [], []>} : vector<8x8xbf16>, vector<8x32xbf16>, vector<8x32xf32> -> vector<8x32xf32>
    %c0_11 = arith.constant 0 : index
    %c32 = arith.constant 32 : index
    %9 = vector.load %arg7[%c0_11, %c32] : memref<8x128xf32, #tpu.memory_space<vmem>>, vector<8x32xf32>
    tpu.vector_store %arg7[%c0_11, %c32], %8 {strides = array<i32>} : memref<8x128xf32, #tpu.memory_space<vmem>>, vector<8x32xf32>,
    %c2 = arith.constant 2 : index
    %c0_12 = arith.constant 0 : index
    %c0_13 = arith.constant 0 : index
    %10 = vector.load %arg1[%c2, %c0_12, %c0_13] : memref<4x8x8xbf16, #tpu.memory_space<vmem>>, vector<1x8x8xbf16>
    %11 = vector.shape_cast %10 : vector<1x8x8xbf16> to vector<8x8xbf16>
    %c0_14 = arith.constant 0 : index
    %c0_15 = arith.constant 0 : index
    %12 = vector.load %arg4[%c0_14, %c0_15] : memref<8x32xbf16, #tpu.memory_space<vmem>>, vector<8x32xbf16>
    %cst_16 = arith.constant dense<0.000000e+00> : vector<8x32xf32>
    %13 = tpu.matmul %11, %12, %cst_16 {dimension_numbers = #tpu.dot_dimension_numbers<[1], [0], [0], [1], [0, 0, 1, 1], [], []>} : vector<8x8xbf16>, vector<8x32xbf16>, vector<8x32xf32> -> vector<8x32xf32>
    %c0_17 = arith.constant 0 : index
    %c64 = arith.constant 64 : index
    %14 = vector.load %arg7[%c0_17, %c64] : memref<8x128xf32, #tpu.memory_space<vmem>>, vector<8x32xf32>
    tpu.vector_store %arg7[%c0_17, %c64], %13 {strides = array<i32>} : memref<8x128xf32, #tpu.memory_space<vmem>>, vector<8x32xf32>,
    %c3 = arith.constant 3 : index
    %c0_18 = arith.constant 0 : index
    %c0_19 = arith.constant 0 : index
    %15 = vector.load %arg1[%c3, %c0_18, %c0_19] : memref<4x8x8xbf16, #tpu.memory_space<vmem>>, vector<1x8x8xbf16>
    %16 = vector.shape_cast %15 : vector<1x8x8xbf16> to vector<8x8xbf16>
    %c0_20 = arith.constant 0 : index
    %c0_21 = arith.constant 0 : index
    %17 = vector.load %arg4[%c0_20, %c0_21] : memref<8x32xbf16, #tpu.memory_space<vmem>>, vector<8x32xbf16>
    %cst_22 = arith.constant dense<0.000000e+00> : vector<8x32xf32>
    %18 = tpu.matmul %16, %17, %cst_22 {dimension_numbers = #tpu.dot_dimension_numbers<[1], [0], [0], [1], [0, 0, 1, 1], [], []>} : vector<8x8xbf16>, vector<8x32xbf16>, vector<8x32xf32> -> vector<8x32xf32>
    %c0_23 = arith.constant 0 : index
    %c96 = arith.constant 96 : index
    %19 = vector.load %arg7[%c0_23, %c96] : memref<8x128xf32, #tpu.memory_space<vmem>>, vector<8x32xf32>
    tpu.vector_store %arg7[%c0_23, %c96], %18 {strides = array<i32>} : memref<8x128xf32, #tpu.memory_space<vmem>>, vector<8x32xf32>,
    %c0_24 = arith.constant 0 : index
    %c0_25 = arith.constant 0 : index
    %20 = vector.load %arg7[%c0_24, %c0_25] : memref<8x128xf32, #tpu.memory_space<vmem>>, vector<8x128xf32>
    %21 = arith.truncf %20 : vector<8x128xf32> to vector<8x128xbf16>
    %cst_26 = arith.constant 0.000000e+00 : f32
    %22 = vector.broadcast %cst_26 : f32 to vector<1x128xf32>
    %cst_27 = arith.constant 0.000000e+00 : f32
    %23 = vector.broadcast %cst_27 : f32 to vector<1x128xf32>
    %c0_28 = arith.constant 0 : index
    %c0_29 = arith.constant 0 : index
    %24 = vector.load %arg3[%c0_28, %c0_29] : memref<32x8xbf16, #tpu.memory_space<vmem>>, vector<32x8xbf16>
    %cst_30 = arith.constant dense<0.000000e+00> : vector<32x128xf32>
    %25 = tpu.matmul %24, %21, %cst_30 {dimension_numbers = #tpu.dot_dimension_numbers<[1], [0], [0], [1], [0, 0, 1, 1], [], []>} : vector<32x8xbf16>, vector<8x128xbf16>, vector<32x128xf32> -> vector<32x128xf32>
    %c0_31 = arith.constant 0 : index
    %c0_32 = arith.constant 0 : index
    %26 = vector.load %arg2[%c0_31, %c0_32] : memref<32x128xi8, #tpu.memory_space<vmem>>, vector<32x128xi8>
    %27 = arith.sitofp %26 : vector<32x128xi8> to vector<32x128xf32>
    %28 = math.absf %25 : vector<32x128xf32>
    %cst_33 = arith.constant 0.000000e+00 : f32
    %29 = vector.broadcast %cst_33 : f32 to vector<32x128xf32>
    %30 = arith.subf %29, %28 : vector<32x128xf32>
    %31 = math.exp %30 : vector<32x128xf32>
    %cst_34 = arith.constant 0.000000e+00 : f32
    %32 = vector.broadcast %cst_34 : f32 to vector<32x128xf32>
    %33 = arith.maximumf %25, %32 : vector<32x128xf32>
    %34 = arith.mulf %25, %27 : vector<32x128xf32>
    %35 = arith.subf %33, %34 : vector<32x128xf32>
    %cst_35 = arith.constant 1.000000e+00 : f32
    %36 = vector.broadcast %cst_35 : f32 to vector<32x128xf32>
    %37 = arith.addf %36, %31 : vector<32x128xf32>
    %38 = math.log %37 : vector<32x128xf32>
    %39 = arith.addf %35, %38 : vector<32x128xf32>
    %cst_36 = arith.constant 1.000000e+00 : f32
    %40 = vector.broadcast %cst_36 : f32 to vector<32x128xf32>
    %41 = arith.addf %40, %31 : vector<32x128xf32>
    %42 = tpu.reciprocal %41 {approx = true} : vector<32x128xf32> -> vector<32x128xf32>
    %cst_37 = arith.constant 0.000000e+00 : f32
    %43 = vector.broadcast %cst_37 : f32 to vector<32x128xf32>
    %44 = arith.cmpf oge, %25, %43 : vector<32x128xf32>
    %45 = arith.mulf %31, %42 : vector<32x128xf32>
    %46 = arith.select %44, %42, %45 : vector<32x128xi1>, vector<32x128xf32>
    %47 = vector.shape_cast %39 : vector<32x128xf32> to vector<1x32x128xf32>
    %cst_38 = arith.constant dense<0.000000e+00> : vector<1xf32>
    %48 = vector.multi_reduction <add>, %47, %cst_38 [1, 2] : vector<1x32x128xf32> to vector<1xf32>
    %49 = vector.shape_cast %48 : vector<1xf32> to vector<1x1x1xf32>
    %50 = vector.extract %49[0, 0, 0] : f32 from vector<1x1x1xf32>
    %cst_39 = arith.constant 0.000000e+00 : f32
    %51 = arith.addf %cst_39, %50 : f32
    %52 = arith.mulf %46, %27 : vector<32x128xf32>
    %cst_40 = arith.constant dense<0.000000e+00> : vector<128xf32>
    %53 = vector.multi_reduction <add>, %52, %cst_40 [0] : vector<32x128xf32> to vector<128xf32>
    %54 = vector.shape_cast %53 : vector<128xf32> to vector<1x128xf32>
    %55 = arith.addf %22, %54 : vector<1x128xf32>
    %56 = arith.addf %46, %27 : vector<32x128xf32>
    %cst_41 = arith.constant dense<0.000000e+00> : vector<128xf32>
    %57 = vector.multi_reduction <add>, %56, %cst_41 [0] : vector<32x128xf32> to vector<128xf32>
    %58 = vector.shape_cast %57 : vector<128xf32> to vector<1x128xf32>
    %59 = arith.addf %23, %58 : vector<1x128xf32>
    %c0_42 = arith.constant 0 : index
    %c0_43 = arith.constant 0 : index
    %60 = vector.load %arg5[%c0_42, %c0_43] : memref<128x4xf32, #tpu.memory_space<vmem>>, vector<128x4xf32>
    %cst_44 = arith.constant dense<0.000000e+00> : vector<1x4xf32>
    %61 = tpu.matmul %55, %60, %cst_44 {dimension_numbers = #tpu.dot_dimension_numbers<[1], [0], [0], [1], [0, 0, 1, 1], [], []>} : vector<1x128xf32>, vector<128x4xf32>, vector<1x4xf32> -> vector<1x4xf32>
    %c0_45 = arith.constant 0 : index
    %c0_46 = arith.constant 0 : index
    %62 = vector.load %arg5[%c0_45, %c0_46] : memref<128x4xf32, #tpu.memory_space<vmem>>, vector<128x4xf32>
    %cst_47 = arith.constant dense<0.000000e+00> : vector<1x4xf32>
    %63 = tpu.matmul %59, %62, %cst_47 {dimension_numbers = #tpu.dot_dimension_numbers<[1], [0], [0], [1], [0, 0, 1, 1], [], []>} : vector<1x128xf32>, vector<128x4xf32>, vector<1x4xf32> -> vector<1x4xf32>
    %cst_48 = arith.constant 2.000000e+00 : f32
    %64 = vector.broadcast %cst_48 : f32 to vector<1x4xf32>
    %65 = arith.mulf %64, %61 : vector<1x4xf32>
    %cst_49 = arith.constant 1.000000e+00 : f32
    %66 = vector.broadcast %cst_49 : f32 to vector<1x4xf32>
    %67 = arith.addf %65, %66 : vector<1x4xf32>
    %cst_50 = arith.constant 1.000000e+00 : f32
    %68 = vector.broadcast %cst_50 : f32 to vector<1x4xf32>
    %69 = arith.addf %63, %68 : vector<1x4xf32>
    %70 = arith.divf %67, %69 : vector<1x4xf32>
    %cst_51 = arith.constant 1.000000e+00 : f32
    %71 = vector.broadcast %cst_51 : f32 to vector<1x4xf32>
    %72 = arith.subf %71, %70 : vector<1x4xf32>
    %73 = vector.shape_cast %72 : vector<1x4xf32> to vector<1x1x4xf32>
    %cst_52 = arith.constant dense<0.000000e+00> : vector<1xf32>
    %74 = vector.multi_reduction <add>, %73, %cst_52 [1, 2] : vector<1x1x4xf32> to vector<1xf32>
    %75 = vector.shape_cast %74 : vector<1xf32> to vector<1x1x1xf32>
    %76 = vector.extract %75[0, 0, 0] : f32 from vector<1x1x1xf32>
    %77 = tpu.iota {dimensions = array<i32: 0>} : vector<8x128xi32>
    %c0_i32 = arith.constant 0 : i32
    %78 = vector.broadcast %c0_i32 : i32 to vector<8x128xi32>
    %79 = arith.cmpi eq, %77, %78 : vector<8x128xi32>
    %cst_53 = arith.constant 0.000000e+00 : f32
    %80 = vector.broadcast %51 : f32 to vector<8x128xf32>
    %81 = vector.broadcast %cst_53 : f32 to vector<8x128xf32>
    %82 = arith.select %79, %80, %81 : vector<8x128xi1>, vector<8x128xf32>
    %c1_i32 = arith.constant 1 : i32
    %83 = vector.broadcast %c1_i32 : i32 to vector<8x128xi32>
    %84 = arith.cmpi eq, %77, %83 : vector<8x128xi32>
    %cst_54 = arith.constant 0.000000e+00 : f32
    %85 = vector.broadcast %76 : f32 to vector<8x128xf32>
    %86 = vector.broadcast %cst_54 : f32 to vector<8x128xf32>
    %87 = arith.select %84, %85, %86 : vector<8x128xi1>, vector<8x128xf32>
    %88 = arith.addf %82, %87 : vector<8x128xf32>
    %89 = vector.shape_cast %88 : vector<8x128xf32> to vector<1x8x128xf32>
    %c0_55 = arith.constant 0 : index
    %c0_56 = arith.constant 0 : index
    %c0_57 = arith.constant 0 : index
    %90 = vector.load %arg6[%c0_55, %c0_56, %c0_57] : memref<1x8x128xf32, #tpu.memory_space<vmem>>, vector<1x8x128xf32>
    tpu.vector_store %arg6[%c0_55, %c0_56, %c0_57], %89 {strides = array<i32>} : memref<1x8x128xf32, #tpu.memory_space<vmem>>, vector<1x8x128xf32>,
    return
  }
  func.func @transform_0(%arg0: i32) -> (i32, i32, i32) {
    %c0_i32 = arith.constant 0 : i32
    %c0_i32_0 = arith.constant 0 : i32
    %c0_i32_1 = arith.constant 0 : i32
    return %arg0, %c0_i32, %c0_i32_0 : i32, i32, i32
  }
  func.func @transform_1(%arg0: i32) -> (i32, i32) {
    %c0_i32 = arith.constant 0 : i32
    %c0_i32_0 = arith.constant 0 : i32
    return %c0_i32, %arg0 : i32, i32
  }
  func.func @transform_2(%arg0: i32) -> (i32, i32) {
    %c0_i32 = arith.constant 0 : i32
    %c0_i32_0 = arith.constant 0 : i32
    %c0_i32_1 = arith.constant 0 : i32
    return %c0_i32, %c0_i32_0 : i32, i32
  }
  func.func @transform_3(%arg0: i32) -> (i32, i32) {
    %c0_i32 = arith.constant 0 : i32
    %c0_i32_0 = arith.constant 0 : i32
    %c0_i32_1 = arith.constant 0 : i32
    return %c0_i32, %c0_i32_0 : i32, i32
  }
  func.func @transform_4(%arg0: i32) -> (i32, i32) {
    %c0_i32 = arith.constant 0 : i32
    %c0_i32_0 = arith.constant 0 : i32
    %c0_i32_1 = arith.constant 0 : i32
    return %c0_i32, %c0_i32_0 : i32, i32
  }
  func.func @transform_5(%arg0: i32) -> (i32, i32, i32) {
    %c0_i32 = arith.constant 0 : i32
    %c0_i32_0 = arith.constant 0 : i32
    %c0_i32_1 = arith.constant 0 : i32
    return %arg0, %c0_i32, %c0_i32_0 : i32, i32, i32
  }
}

</mosaic_0001>

<llo_original>
// kernel: _device_loss.1
$region0: #{_device_loss.1}
  #allocation0 [shape = 'u32[]', space=smem, size = 0x4, offset = 0x4, fixed_abs, tag = 'smem constant byte address 0x4 - core index']
  #allocation1 [shape = 'u32[144,128]{1,0:T(1,128)}', space=vmem, size = 0x12000, scoped, tag = 'internal scratch']
  #allocation2 [shape = 'f32[8,128]{1,0:T(8,128)}', space=vmem, size = 0x1000, scoped, tag = 'scratch operand']
  %s0 = inlined_call_operand.vmem [shape: bf16[8,8,8], index: 0, kind: input, shape index: {}]
  %s1 = inlined_call_operand.vmem [shape: s8[32,256], index: 1, kind: input, shape index: {}]
  %s2 = inlined_call_operand.vmem [shape: bf16[32,8], index: 2, kind: input, shape index: {}]
  %s3 = inlined_call_operand.vmem [shape: bf16[8,32], index: 3, kind: input, shape index: {}]
  %s4 = inlined_call_operand.vmem [shape: f32[128,4], index: 4, kind: input, shape index: {}]
  %s5 = inlined_call_operand.vmem [shape: f32[2,8,128], index: 5, kind: output, shape index: {}]
  %s6 = sld [smem:[#allocation0]]
  $region53: #{_device_loss.1} parent=0
    _
  %s8 = ssub.s32 1, %s6
  %s9 = scalar_select 0, %s8, %s6
  loop: start=0, step=1, limit=4
  $region2: #{_device_loss.1} parent=0 // loop_pre_header
    _
  $region3: #{_device_loss.1} parent=0 // loop_header
    %s11 = sphi 0, %s15
    %p12 = scmp.ge.s32.totalorder %s11, 4
    %s21 = sphi 0, %s23
    %s24 = sphi 0, %s21
    %s25 = sphi 0, %s24
    %s41 = sphi 0, %s25
    %s47 = sphi 0, %s49
    %s50 = sphi 0, %s47
    %s51 = sphi 0, %s50
    %s67 = sphi 0, %s51
    %s71 = sphi 0, %s71
    %s73 = sphi 0, %s71
    %s74 = sphi 0, %s73
    %s88 = sphi 0, %s74
    %s92 = sphi 0, %s92
    %s94 = sphi 0, %s92
    %s95 = sphi 0, %s94
    %s109 = sphi 0, %s95
    %s113 = sphi 0, %s113
    %s115 = sphi 0, %s113
    %s116 = sphi 0, %s115
    %s130 = sphi 0, %s116
    %s136 = sphi 0, %s138
    %s139 = sphi 0, %s136
    %s140 = sphi 0, %s139
    %s156 = sphi 0, %s140
  $region4: #{_device_loss.1} parent=0 // loop_header_branch
    %14 = sbr.rel (%p12) target = $region8
  $region5: #{_device_loss.1} parent=0 // loop_body
    %s16 = ssub.s32 %s11, 1
    %s17 = ssub.s32 %s11, 2
    %s18 = sadd.s32 %s11, 1
    %s19 = ssub.s32 %s11, %s18
    %p20 = scmp.eq.s32.totalorder %s19, 0
    %s22 = sadd.s32 %s21, 1
    %s23 = scalar_select %p20, %s21, %s22
    %p26 = pneg %p20
    %p27 = scmp.eq.s32.totalorder %s11, 1
    %p28 = por %p26, %p27
    %p29 = scmp.ne.s32.totalorder %s21, %s24
    %p30 = scmp.eq.s32.totalorder %s11, 0
    %p31 = por %p29, %p30
    %p32 = scmp.ne.s32.totalorder %s21, %s24
    %p33 = scmp.eq.s32.totalorder %s16, 1
    %p34 = por %p32, %p33
    %p35 = scmp.ne.s32.totalorder %s24, %s25
    %p36 = scmp.eq.s32.totalorder %s16, 0
    %p37 = por %p35, %p36
    %p38 = scmp.ne.s32.totalorder %s24, %s25
    %p39 = scmp.eq.s32.totalorder %s17, 1
    %p40 = por %p38, %p39
    %p42 = scmp.ne.s32.totalorder %s25, %s41
    %p43 = scmp.eq.s32.totalorder %s17, 0
    %p44 = por %p42, %p43
    %s45 = ssub.s32 %s11, %s18
    %p46 = scmp.eq.s32.totalorder %s45, 0
    %s48 = sadd.s32 %s47, 1
    %s49 = scalar_select %p46, %s47, %s48
    %p52 = pneg %p46
    %p53 = scmp.eq.s32.totalorder %s11, 1
    %p54 = por %p52, %p53
    %p55 = scmp.ne.s32.totalorder %s47, %s50
    %p56 = scmp.eq.s32.totalorder %s11, 0
    %p57 = por %p55, %p56
    %p58 = scmp.ne.s32.totalorder %s47, %s50
    %p59 = scmp.eq.s32.totalorder %s16, 1
    %p60 = por %p58, %p59
    %p61 = scmp.ne.s32.totalorder %s50, %s51
    %p62 = scmp.eq.s32.totalorder %s16, 0
    %p63 = por %p61, %p62
    %p64 = scmp.ne.s32.totalorder %s50, %s51
    %p65 = scmp.eq.s32.totalorder %s17, 1
    %p66 = por %p64, %p65
    %p68 = scmp.ne.s32.totalorder %s51, %s67
    %p69 = scmp.eq.s32.totalorder %s17, 0
    %p70 = por %p68, %p69
    %s72 = sadd.s32 %s71, 1
    %p75 = scmp.eq.s32.totalorder %s11, 1
    %p76 = scmp.ne.s32.totalorder %s71, %s73
    %p77 = scmp.eq.s32.totalorder %s11, 0
    %p78 = por %p76, %p77
    %p79 = scmp.ne.s32.totalorder %s71, %s73
    %p80 = scmp.eq.s32.totalorder %s16, 1
    %p81 = por %p79, %p80
    %p82 = scmp.ne.s32.totalorder %s73, %s74
    %p83 = scmp.eq.s32.totalorder %s16, 0
    %p84 = por %p82, %p83
    %p85 = scmp.ne.s32.totalorder %s73, %s74
    %p86 = scmp.eq.s32.totalorder %s17, 1
    %p87 = por %p85, %p86
    %p89 = scmp.ne.s32.totalorder %s74, %s88
    %p90 = scmp.eq.s32.totalorder %s17, 0
    %p91 = por %p89, %p90
    %s93 = sadd.s32 %s92, 1
    %p96 = scmp.eq.s32.totalorder %s11, 1
    %p97 = scmp.ne.s32.totalorder %s92, %s94
    %p98 = scmp.eq.s32.totalorder %s11, 0
    %p99 = por %p97, %p98
    %p100 = scmp.ne.s32.totalorder %s92, %s94
    %p101 = scmp.eq.s32.totalorder %s16, 1
    %p102 = por %p100, %p101
    %p103 = scmp.ne.s32.totalorder %s94, %s95
    %p104 = scmp.eq.s32.totalorder %s16, 0
    %p105 = por %p103, %p104
    %p106 = scmp.ne.s32.totalorder %s94, %s95
    %p107 = scmp.eq.s32.totalorder %s17, 1
    %p108 = por %p106, %p107
    %p110 = scmp.ne.s32.totalorder %s95, %s109
    %p111 = scmp.eq.s32.totalorder %s17, 0
    %p112 = por %p110, %p111
    %s114 = sadd.s32 %s113, 1
    %p117 = scmp.eq.s32.totalorder %s11, 1
    %p118 = scmp.ne.s32.totalorder %s113, %s115
    %p119 = scmp.eq.s32.totalorder %s11, 0
    %p120 = por %p118, %p119
    %p121 = scmp.ne.s32.totalorder %s113, %s115
    %p122 = scmp.eq.s32.totalorder %s16, 1
    %p123 = por %p121, %p122
    %p124 = scmp.ne.s32.totalorder %s115, %s116
    %p125 = scmp.eq.s32.totalorder %s16, 0
    %p126 = por %p124, %p125
    %p127 = scmp.ne.s32.totalorder %s115, %s116
    %p128 = scmp.eq.s32.totalorder %s17, 1
    %p129 = por %p127, %p128
    %p131 = scmp.ne.s32.totalorder %s116, %s130
    %p132 = scmp.eq.s32.totalorder %s17, 0
    %p133 = por %p131, %p132
    %s134 = ssub.s32 %s11, %s18
    %p135 = scmp.eq.s32.totalorder %s134, 0
    %s137 = sadd.s32 %s136, 1
    %s138 = scalar_select %p135, %s136, %s137
    %p141 = pneg %p135
    %p142 = scmp.eq.s32.totalorder %s11, 1
    %p143 = por %p141, %p142
    %p144 = scmp.ne.s32.totalorder %s136, %s139
    %p145 = scmp.eq.s32.totalorder %s11, 0
    %p146 = por %p144, %p145
    %p147 = scmp.ne.s32.totalorder %s136, %s139
    %p148 = scmp.eq.s32.totalorder %s16, 1
    %p149 = por %p147, %p148
    %p150 = scmp.ne.s32.totalorder %s139, %s140
    %p151 = scmp.eq.s32.totalorder %s16, 0
    %p152 = por %p150, %p151
    %p153 = scmp.ne.s32.totalorder %s139, %s140
    %p154 = scmp.eq.s32.totalorder %s17, 1
    %p155 = por %p153, %p154
    %p157 = scmp.ne.s32.totalorder %s140, %s156
    %p158 = scmp.eq.s32.totalorder %s17, 0
    %p159 = por %p157, %p158
    %p160 = scmp.le.s32.totalorder 1, %s11
    %p161 = scmp.lt.s32.totalorder %s11, 3
    %p162 = pnand %p160, %p161
    %p163 = pneg %p162
    // Predicated region
    $region9: #{_device_loss.1} parent=5 // pred_check
      _
    $region10: #{_device_loss.1} parent=5 // pred_check_branch
      %165 = sbr.rel (%p162) target = $region12
    $region11: #{_device_loss.1} parent=5 // pred_region
      %s166 = ssub.s32 %s11, 1
      // Predicated region
      $region13: #{_device_loss.1} parent=11 // pred_check
        %p167 = pneg %p84
      $region14: #{_device_loss.1} parent=11 // pred_check_branch
        %169 = sbr.rel (%p167) target = $region16
      $region15: #{_device_loss.1} parent=11 // pred_region
        _
      $region16: #{_device_loss.1} parent=11 // pred_fallthru
        _
      // Predicated region
      $region17: #{_device_loss.1} parent=11 // pred_check
        %p170 = pneg %p105
      $region18: #{_device_loss.1} parent=11 // pred_check_branch
        %172 = sbr.rel (%p170) target = $region20
      $region19: #{_device_loss.1} parent=11 // pred_region
        _
      $region20: #{_device_loss.1} parent=11 // pred_fallthru
        _
      // Predicated region
      $region21: #{_device_loss.1} parent=11 // pred_check
        %p173 = pneg %p126
      $region22: #{_device_loss.1} parent=11 // pred_check_branch
        %175 = sbr.rel (%p173) target = $region24
      $region23: #{_device_loss.1} parent=11 // pred_region
        _
      $region24: #{_device_loss.1} parent=11 // pred_fallthru
        _
    $region12: #{_device_loss.1} parent=5 // pred_fallthru
      _
    %p176 = scmp.lt.s32.totalorder %s11, 2
    // Predicated region
    $region25: #{_device_loss.1} parent=5 // pred_check
      %p177 = pneg %p176
    $region26: #{_device_loss.1} parent=5 // pred_check_branch
      %179 = sbr.rel (%p177) target = $region28
    $region27: #{_device_loss.1} parent=5 // pred_region
      // Predicated region
      $region29: #{_device_loss.1} parent=27 // pred_check
        %p180 = pneg %p31
      $region30: #{_device_loss.1} parent=27 // pred_check_branch
        %182 = sbr.rel (%p180) target = $region32
      $region31: #{_device_loss.1} parent=27 // pred_region
        %s183 = smul.u32 4, %s11
        %p184 = scmp.lt.s32.totalorder %s183, 7
        %s185 = scalar_select %p184, %s183, 7
        %s186 = smul.addr %s185, 4
        %s187 = scalar_lea.vmem %s0, %s186
        %s188 = smul.u32 4, %s11
      $region32: #{_device_loss.1} parent=27 // pred_fallthru
        _
      // Predicated region
      $region33: #{_device_loss.1} parent=27 // pred_check
        %p189 = pneg %p57
      $region34: #{_device_loss.1} parent=27 // pred_check_branch
        %191 = sbr.rel (%p189) target = $region36
      $region35: #{_device_loss.1} parent=27 // pred_region
        %p192 = scmp.lt.s32.totalorder %s11, 1
        %s193 = scalar_select %p192, %s11, 1
        %s194 = smul.addr %s193, 8
        %s195 = scalar_lea.vmem %s1, %s194
      $region36: #{_device_loss.1} parent=27 // pred_fallthru
        _
    $region28: #{_device_loss.1} parent=5 // pred_fallthru
      _
    %p196 = scmp.le.s32.totalorder 1, %s11
    %p197 = scmp.lt.s32.totalorder %s11, 3
    %p198 = pnand %p196, %p197
    %p199 = pneg %p198
    // Predicated region
    $region37: #{_device_loss.1} parent=5 // pred_check
      _
    $region38: #{_device_loss.1} parent=5 // pred_check_branch
      %201 = sbr.rel (%p198) target = $region40
    $region39: #{_device_loss.1} parent=5 // pred_region
      %s202 = ssub.s32 %s11, 1
      %s203 = smul.u32 4, %s16
      %p204 = scmp.lt.s32.totalorder %s203, 7
      %s205 = scalar_select %p204, %s203, 7
      %s206 = smul.addr %s205, 4
      %s207 = scalar_lea.vmem %s0, %s206
      %p208 = pneg %p37
      %p209 = pneg %p34
      %p210 = scmp.lt.s32.totalorder %s16, 1
      %s211 = scalar_select %p210, %s16, 1
      %s212 = smul.addr %s211, 8
      %s213 = scalar_lea.vmem %s1, %s212
      %p214 = pneg %p63
      %p215 = pneg %p60
      %p216 = pneg %p84
      %p217 = pneg %p81
      %p218 = pneg %p105
      %p219 = pneg %p102
      %p220 = pneg %p126
      %p221 = pneg %p123
      %p222 = pneg %p152
      %p223 = pneg %p149
      %p224 = scmp.lt.s32.totalorder %s16, 1
      %s225 = scalar_select %p224, %s16, 1
      %s226 = smul.addr %s225, 8
      %s227 = scalar_lea.vmem %s5, %s226
      %s228 = smul.u32 4, %s16
      %p229 = scmp.lt.s32.totalorder %s228, 7
      %s230 = scalar_select %p229, %s228, 7
      %s231 = smul.addr %s230, 4
      %s232 = scalar_lea.vmem %s0, %s231
      %s233 = smul.u32 4, %s16
      %p234 = scmp.lt.s32.totalorder %s16, 1
      %s235 = scalar_select %p234, %s16, 1
      %s236 = smul.addr %s235, 8
      %s237 = scalar_lea.vmem %s1, %s236
      %p238 = scmp.lt.s32.totalorder %s16, 1
      %s239 = scalar_select %p238, %s16, 1
      %s240 = smul.addr %s239, 8
      %s241 = scalar_lea.vmem %s5, %s240
      %v243 = vld [vmem:[%s232] sm:$0xf]
      %v244 = vld [vmem:[%s3] sm:$0xf]
      %vm245 = vcmask 64512
      %v247 = vsel %vm245, %v243, 0
      %vm249 = vcmask 1043456
      %v251 = vsel %vm249, %v244, 0
      %253 = vmatprep.subr.bf16.mxu0 0
      %254 = vmatpush1.bf16.msra.mxu0 %v251
      %255 = vmatprep.subr.bf16.mxu0 0
      %256 = vmatpush1.bf16.msra.mxu0 0
      %257 = vmatprep.subr.bf16.mxu0 0
      %258 = vmatpush1.bf16.msra.mxu0 0
      %259 = vmatprep.subr.bf16.mxu0 0
      %260 = vmatpush1.bf16.msra.mxu0 0
      %261 = vmatprep.subr.bf16.mxu0 0
      %262 = vmatpush1.bf16.msra.mxu0 0
      %263 = vmatprep.subr.bf16.mxu0 0
      %264 = vmatpush1.bf16.msra.mxu0 0
      %265 = vmatprep.subr.bf16.mxu0 0
      %266 = vmatpush1.bf16.msra.mxu0 0
      %267 = vmatprep.subr.bf16.mxu0 0
      %268 = vmatpush1.bf16.msra.mxu0 0
      %269 = vmatprep.subr.bf16.mxu0 0
      %270 = vmatpush1.bf16.msra.mxu0 0
      %271 = vmatprep.subr.bf16.mxu0 0
      %272 = vmatpush1.bf16.msra.mxu0 0
      %273 = vmatprep.subr.bf16.mxu0 0
      %274 = vmatpush1.bf16.msra.mxu0 0
      %275 = vmatprep.subr.bf16.mxu0 0
      %276 = vmatpush1.bf16.msra.mxu0 0
      %277 = vmatprep.subr.bf16.mxu0 0
      %278 = vmatpush1.bf16.msra.mxu0 0
      %279 = vmatprep.subr.bf16.mxu0 0
      %280 = vmatpush1.bf16.msra.mxu0 0
      %281 = vmatprep.subr.bf16.mxu0 0
      %282 = vmatpush1.bf16.msra.mxu0 0
      %283 = vmatprep.subr.bf16.mxu0 0
      %284 = vmatpush1.bf16.msra.mxu0 0
      %285 = vmatprep.mubr.bf16.mxu0 0
      %286 = vmatmul.mubr.bf16.gmra.mrb[0].mxu0 %v247
      %v287 = vpop.f32.mrb[0].mxu0
      %v288 = vadd.f32 0.0, %v287
      %v289 = vpop.f32.mrb[0].mxu0
      %v290 = vpop.f32.mrb[0].mxu0
      %v291 = vpop.f32.mrb[0].mxu0
      %292 = vdwg.mxu0
      %vm293 = vcmask 261120
      %294 = vst.msk [vmem:[#allocation2] sm:$0xff] %vm293, %v288
      %s295 = scalar_lea.vmem %s232, 4
      %v296 = vld [vmem:[%s295] sm:$0xf]
      %v297 = vld [vmem:[%s3] sm:$0xf]
      %v299 = vsel %vm245, %v296, 0
      %v302 = vsel %vm249, %v297, 0
      %304 = vmatprep.subr.bf16.mxu0 0
      %305 = vmatpush1.bf16.msra.mxu0 %v302
      %306 = vmatprep.subr.bf16.mxu0 0
      %307 = vmatpush1.bf16.msra.mxu0 0
      %308 = vmatprep.subr.bf16.mxu0 0
      %309 = vmatpush1.bf16.msra.mxu0 0
      %310 = vmatprep.subr.bf16.mxu0 0
      %311 = vmatpush1.bf16.msra.mxu0 0
      %312 = vmatprep.subr.bf16.mxu0 0
      %313 = vmatpush1.bf16.msra.mxu0 0
      %314 = vmatprep.subr.bf16.mxu0 0
      %315 = vmatpush1.bf16.msra.mxu0 0
      %316 = vmatprep.subr.bf16.mxu0 0
      %317 = vmatpush1.bf16.msra.mxu0 0
      %318 = vmatprep.subr.bf16.mxu0 0
      %319 = vmatpush1.bf16.msra.mxu0 0
      %320 = vmatprep.subr.bf16.mxu0 0
      %321 = vmatpush1.bf16.msra.mxu0 0
      %322 = vmatprep.subr.bf16.mxu0 0
      %323 = vmatpush1.bf16.msra.mxu0 0
      %324 = vmatprep.subr.bf16.mxu0 0
      %325 = vmatpush1.bf16.msra.mxu0 0
      %326 = vmatprep.subr.bf16.mxu0 0
      %327 = vmatpush1.bf16.msra.mxu0 0
      %328 = vmatprep.subr.bf16.mxu0 0
      %329 = vmatpush1.bf16.msra.mxu0 0
      %330 = vmatprep.subr.bf16.mxu0 0
      %331 = vmatpush1.bf16.msra.mxu0 0
      %332 = vmatprep.subr.bf16.mxu0 0
      %333 = vmatpush1.bf16.msra.mxu0 0
      %334 = vmatprep.subr.bf16.mxu0 0
      %335 = vmatpush1.bf16.msra.mxu0 0
      %336 = vmatprep.mubr.bf16.mxu0 0
      %337 = vmatmul.mubr.bf16.gmra.mrb[0].mxu0 %v299
      %v338 = vpop.f32.mrb[0].mxu0
      %v339 = vadd.f32 0.0, %v338
      %v340 = vpop.f32.mrb[0].mxu0
      %v341 = vpop.f32.mrb[0].mxu0
      %v342 = vpop.f32.mrb[0].mxu0
      %343 = vdwg.mxu0
      %345 = vrot.lane.b32.xlu0 %v339, 32
      %v346 = vpop.permute.xlu0 %345
      %vm348 = vcmask 523520
      %349 = vst.msk [vmem:[#allocation2] sm:$0xff] %vm348, %v346
      %s350 = scalar_lea.vmem %s232, 8
      %v351 = vld [vmem:[%s350] sm:$0xf]
      %v352 = vld [vmem:[%s3] sm:$0xf]
      %v354 = vsel %vm245, %v351, 0
      %v357 = vsel %vm249, %v352, 0
      %359 = vmatprep.subr.bf16.mxu0 0
      %360 = vmatpush1.bf16.msra.mxu0 %v357
      %361 = vmatprep.subr.bf16.mxu0 0
      %362 = vmatpush1.bf16.msra.mxu0 0
      %363 = vmatprep.subr.bf16.mxu0 0
      %364 = vmatpush1.bf16.msra.mxu0 0
      %365 = vmatprep.subr.bf16.mxu0 0
      %366 = vmatpush1.bf16.msra.mxu0 0
      %367 = vmatprep.subr.bf16.mxu0 0
      %368 = vmatpush1.bf16.msra.mxu0 0
      %369 = vmatprep.subr.bf16.mxu0 0
      %370 = vmatpush1.bf16.msra.mxu0 0
      %371 = vmatprep.subr.bf16.mxu0 0
      %372 = vmatpush1.bf16.msra.mxu0 0
      %373 = vmatprep.subr.bf16.mxu0 0
      %374 = vmatpush1.bf16.msra.mxu0 0
      %375 = vmatprep.subr.bf16.mxu0 0
      %376 = vmatpush1.bf16.msra.mxu0 0
      %377 = vmatprep.subr.bf16.mxu0 0
      %378 = vmatpush1.bf16.msra.mxu0 0
      %379 = vmatprep.subr.bf16.mxu0 0
      %380 = vmatpush1.bf16.msra.mxu0 0
      %381 = vmatprep.subr.bf16.mxu0 0
      %382 = vmatpush1.bf16.msra.mxu0 0
      %383 = vmatprep.subr.bf16.mxu0 0
      %384 = vmatpush1.bf16.msra.mxu0 0
      %385 = vmatprep.subr.bf16.mxu0 0
      %386 = vmatpush1.bf16.msra.mxu0 0
      %387 = vmatprep.subr.bf16.mxu0 0
      %388 = vmatpush1.bf16.msra.mxu0 0
      %389 = vmatprep.subr.bf16.mxu0 0
      %390 = vmatpush1.bf16.msra.mxu0 0
      %391 = vmatprep.mubr.bf16.mxu0 0
      %392 = vmatmul.mubr.bf16.gmra.mrb[0].mxu0 %v354
      %v393 = vpop.f32.mrb[0].mxu0
      %v394 = vadd.f32 0.0, %v393
      %v395 = vpop.f32.mrb[0].mxu0
      %v396 = vpop.f32.mrb[0].mxu0
      %v397 = vpop.f32.mrb[0].mxu0
      %398 = vdwg.mxu0
      %400 = vrot.lane.b32.xlu0 %v394, 64
      %v401 = vpop.permute.xlu0 %400
      %vm403 = vcmask 785920
      %404 = vst.msk [vmem:[#allocation2] sm:$0xff] %vm403, %v401
      %s405 = scalar_lea.vmem %s232, 12
      %v406 = vld [vmem:[%s405] sm:$0xf]
      %v407 = vld [vmem:[%s3] sm:$0xf]
      %v409 = vsel %vm245, %v406, 0
      %v412 = vsel %vm249, %v407, 0
      %414 = vmatprep.subr.bf16.mxu0 0
      %415 = vmatpush1.bf16.msra.mxu0 %v412
      %416 = vmatprep.subr.bf16.mxu0 0
      %417 = vmatpush1.bf16.msra.mxu0 0
      %418 = vmatprep.subr.bf16.mxu0 0
      %419 = vmatpush1.bf16.msra.mxu0 0
      %420 = vmatprep.subr.bf16.mxu0 0
      %421 = vmatpush1.bf16.msra.mxu0 0
      %422 = vmatprep.subr.bf16.mxu0 0
      %423 = vmatpush1.bf16.msra.mxu0 0
      %424 = vmatprep.subr.bf16.mxu0 0
      %425 = vmatpush1.bf16.msra.mxu0 0
      %426 = vmatprep.subr.bf16.mxu0 0
      %427 = vmatpush1.bf16.msra.mxu0 0
      %428 = vmatprep.subr.bf16.mxu0 0
      %429 = vmatpush1.bf16.msra.mxu0 0
      %430 = vmatprep.subr.bf16.mxu0 0
      %431 = vmatpush1.bf16.msra.mxu0 0
      %432 = vmatprep.subr.bf16.mxu0 0
      %433 = vmatpush1.bf16.msra.mxu0 0
      %434 = vmatprep.subr.bf16.mxu0 0
      %435 = vmatpush1.bf16.msra.mxu0 0
      %436 = vmatprep.subr.bf16.mxu0 0
      %437 = vmatpush1.bf16.msra.mxu0 0
      %438 = vmatprep.subr.bf16.mxu0 0
      %439 = vmatpush1.bf16.msra.mxu0 0
      %440 = vmatprep.subr.bf16.mxu0 0
      %441 = vmatpush1.bf16.msra.mxu0 0
      %442 = vmatprep.subr.bf16.mxu0 0
      %443 = vmatpush1.bf16.msra.mxu0 0
      %444 = vmatprep.subr.bf16.mxu0 0
      %445 = vmatpush1.bf16.msra.mxu0 0
      %446 = vmatprep.mubr.bf16.mxu0 0
      %447 = vmatmul.mubr.bf16.gmra.mrb[0].mxu0 %v409
      %v448 = vpop.f32.mrb[0].mxu0
      %v449 = vadd.f32 0.0, %v448
      %v450 = vpop.f32.mrb[0].mxu0
      %v451 = vpop.f32.mrb[0].mxu0
      %v452 = vpop.f32.mrb[0].mxu0
      %453 = vdwg.mxu0
      %455 = vrot.lane.b32.xlu0 %v449, 96
      %v456 = vpop.permute.xlu0 %455
      %vm458 = vcmask 1048320
      %459 = vst.msk [vmem:[#allocation2] sm:$0xff] %vm458, %v456
      %v460 = vld [vmem:[#allocation2] sm:$0xff]
      %v461 = vpack.c.bf16 %v460, %v460
      %v462 = vld [vmem:[%s2] sm:$0xf]
      %v463 = vld [vmem:[%s2 + $0x4] sm:$0xf]
      %v464 = vld [vmem:[%s2 + $0x8] sm:$0xf]
      %v465 = vld [vmem:[%s2 + $0xc] sm:$0xf]
      %v470 = vunpack.c.l.b16 %v462
      %v471 = vunpack.c.l.b16 %v463
      %v472 = vunpack.c.l.b16 %v464
      %v473 = vunpack.c.l.b16 %v465
      %v474 = vpack.c.b16 %v471, %v470
      %v475 = vpack.c.b16 %v473, %v472
      %v477 = vsel %vm245, %v474, 0
      %v480 = vsel %vm245, %v475, 0
      %v483 = vsel %vm249, %v461, 0
      %485 = vmatprep.subr.bf16.mxu0 0
      %486 = vmatpush1.bf16.msra.mxu0 %v483
      %487 = vmatprep.subr.bf16.mxu0 0
      %488 = vmatpush1.bf16.msra.mxu0 0
      %489 = vmatprep.subr.bf16.mxu0 0
      %490 = vmatpush1.bf16.msra.mxu0 0
      %491 = vmatprep.subr.bf16.mxu0 0
      %492 = vmatpush1.bf16.msra.mxu0 0
      %493 = vmatprep.subr.bf16.mxu0 0
      %494 = vmatpush1.bf16.msra.mxu0 0
      %495 = vmatprep.subr.bf16.mxu0 0
      %496 = vmatpush1.bf16.msra.mxu0 0
      %497 = vmatprep.subr.bf16.mxu0 0
      %498 = vmatpush1.bf16.msra.mxu0 0
      %499 = vmatprep.subr.bf16.mxu0 0
      %500 = vmatpush1.bf16.msra.mxu0 0
      %501 = vmatprep.subr.bf16.mxu0 0
      %502 = vmatpush1.bf16.msra.mxu0 0
      %503 = vmatprep.subr.bf16.mxu0 0
      %504 = vmatpush1.bf16.msra.mxu0 0
      %505 = vmatprep.subr.bf16.mxu0 0
      %506 = vmatpush1.bf16.msra.mxu0 0
      %507 = vmatprep.subr.bf16.mxu0 0
      %508 = vmatpush1.bf16.msra.mxu0 0
      %509 = vmatprep.subr.bf16.mxu0 0
      %510 = vmatpush1.bf16.msra.mxu0 0
      %511 = vmatprep.subr.bf16.mxu0 0
      %512 = vmatpush1.bf16.msra.mxu0 0
      %513 = vmatprep.subr.bf16.mxu0 0
      %514 = vmatpush1.bf16.msra.mxu0 0
      %515 = vmatprep.subr.bf16.mxu0 0
      %516 = vmatpush1.bf16.msra.mxu0 0
      %517 = vmatprep.mubr.bf16.mxu0 0
      %518 = vmatmul.mubr.bf16.gmra.mrb[0].mxu0 %v477
      %v519 = vpop.f32.mrb[0].mxu0
      %v520 = vadd.f32 0.0, %v519
      %v521 = vpop.f32.mrb[0].mxu0
      %v522 = vpop.f32.mrb[0].mxu0
      %v523 = vadd.f32 0.0, %v522
      %v524 = vpop.f32.mrb[0].mxu0
      %525 = vmatprep.mubr.bf16.mxu0 0
      %526 = vmatmul.mubr.bf16.gmra.mrb[0].mxu0 %v480
      %v527 = vpop.f32.mrb[0].mxu0
      %v528 = vadd.f32 0.0, %v527
      %v529 = vpop.f32.mrb[0].mxu0
      %v530 = vpop.f32.mrb[0].mxu0
      %v531 = vadd.f32 0.0, %v530
      %v532 = vpop.f32.mrb[0].mxu0
      %533 = vdwg.mxu0
      %v534 = vld [vmem:[%s237] sm:$0xff]
      %v535 = vunpack.c.0.s8 %v534
      %v536 = vunpack.c.1.s8 %v534
      %v537 = vunpack.c.2.s8 %v534
      %v538 = vunpack.c.3.s8 %v534
      %v539 = vcvt.s32.f32 %v535
      %v540 = vcvt.s32.f32 %v536
      %v541 = vcvt.s32.f32 %v537
      %v542 = vcvt.s32.f32 %v538
      %v543 = vand.u32 2147483647, %v520
      %v544 = vand.u32 2147483647, %v523
      %v545 = vand.u32 2147483647, %v528
      %v546 = vand.u32 2147483647, %v531
      %v547 = vsub.f32 0.0, %v543
      %v548 = vsub.f32 0.0, %v544
      %v549 = vsub.f32 0.0, %v545
      %v550 = vsub.f32 0.0, %v546
      %v551 = vmul.f32 %v547, 1.442695
      %v552 = vpow.pop %v551
      %v553 = vmul.f32 %v548, 1.442695
      %v554 = vpow.pop %v553
      %v555 = vmul.f32 %v549, 1.442695
      %v556 = vpow.pop %v555
      %v557 = vmul.f32 %v550, 1.442695
      %v558 = vpow.pop %v557
      %v559 = vmax.f32 %v520, 0.0
      %v560 = vmax.f32 %v523, 0.0
      %v561 = vmax.f32 %v528, 0.0
      %v562 = vmax.f32 %v531, 0.0
      %v563 = vmul.f32 %v520, %v539
      %v564 = vmul.f32 %v523, %v540
      %v565 = vmul.f32 %v528, %v541
      %v566 = vmul.f32 %v531, %v542
      %v567 = vsub.f32 %v559, %v563
      %v568 = vsub.f32 %v560, %v564
      %v569 = vsub.f32 %v561, %v565
      %v570 = vsub.f32 %v562, %v566
      %v571 = vadd.f32 %v552, 1.0
      %v572 = vadd.f32 %v554, 1.0
      %v573 = vadd.f32 %v556, 1.0
      %v574 = vadd.f32 %v558, 1.0
      %v575 = vlog2.pop %v571
      %v576 = vmul.f32 %v575, 0.6931472
      %v577 = vlog2.pop %v572
      %v578 = vmul.f32 %v577, 0.6931472
      %v579 = vlog2.pop %v573
      %v580 = vmul.f32 %v579, 0.6931472
      %v581 = vlog2.pop %v574
      %v582 = vmul.f32 %v581, 0.6931472
      %v583 = vadd.f32 %v567, %v576
      %v584 = vadd.f32 %v568, %v578
      %v585 = vadd.f32 %v569, %v580
      %v586 = vadd.f32 %v570, %v582
      %v587 = vrcp.pop %v571
      %v588 = vrcp.pop %v572
      %v589 = vrcp.pop %v573
      %v590 = vrcp.pop %v574
      %vm591 = vcmp.ge.f32.partialorder %v520, 0.0
      %vm592 = vcmp.ge.f32.partialorder %v523, 0.0
      %vm593 = vcmp.ge.f32.partialorder %v528, 0.0
      %vm594 = vcmp.ge.f32.partialorder %v531, 0.0
      %v595 = vmul.f32 %v552, %v587
      %v596 = vmul.f32 %v554, %v588
      %v597 = vmul.f32 %v556, %v589
      %v598 = vmul.f32 %v558, %v590
      %v599 = vsel %vm591, %v587, %v595
      %v600 = vsel %vm592, %v588, %v596
      %v601 = vsel %vm593, %v589, %v597
      %v602 = vsel %vm594, %v590, %v598
      %v603 = vadd.f32 %v583, %v584
      %v604 = vadd.f32 %v603, %v585
      %v605 = vadd.f32 %v604, %v586
      %606 = vadd.xlane.f32.xlu0 %v605
      %v607 = vpop.xlane.xlu0 %606
      %v608 = vrot.slane %v607, 4
      %v609 = vadd.f32 %v607, %v608
      %v610 = vrot.slane %v609, 2
      %v611 = vadd.f32 %v609, %v610
      %v612 = vrot.slane %v611, 1
      %v613 = vadd.f32 %v611, %v612
      %s614 = vtos %v613
      %s615 = sadd.f32 %s614, 0.0
      %v616 = vmul.f32 %v599, %v539
      %v617 = vmul.f32 %v600, %v540
      %v618 = vmul.f32 %v601, %v541
      %v619 = vmul.f32 %v602, %v542
      %v620 = vadd.f32 %v616, %v617
      %v621 = vadd.f32 %v620, %v618
      %v622 = vadd.f32 %v621, %v619
      %v623 = vrot.slane %v622, 4
      %v624 = vadd.f32 %v622, %v623
      %v625 = vrot.slane %v624, 2
      %v626 = vadd.f32 %v624, %v625
      %v627 = vrot.slane %v626, 1
      %v628 = vadd.f32 %v626, %v627
      %v629 = vadd.f32 %v628, 0.0
      %v630 = vadd.f32 %v599, %v539
      %v631 = vadd.f32 %v600, %v540
      %v632 = vadd.f32 %v601, %v541
      %v633 = vadd.f32 %v602, %v542
      %v634 = vadd.f32 %v630, %v631
      %v635 = vadd.f32 %v634, %v632
      %v636 = vadd.f32 %v635, %v633
      %v637 = vrot.slane %v636, 4
      %v638 = vadd.f32 %v636, %v637
      %v639 = vrot.slane %v638, 2
      %v640 = vadd.f32 %v638, %v639
      %v641 = vrot.slane %v640, 1
      %v642 = vadd.f32 %v640, %v641
      %v643 = vadd.f32 %v642, 0.0
      %v644 = vld [vmem:[%s4] sm:$0xff]
      %v645 = vld [vmem:[%s4 + $0x8] sm:$0xff]
      %v646 = vld [vmem:[%s4 + $0x10] sm:$0xff]
      %v647 = vld [vmem:[%s4 + $0x18] sm:$0xff]
      %v648 = vld [vmem:[%s4 + $0x20] sm:$0xff]
      %v649 = vld [vmem:[%s4 + $0x28] sm:$0xff]
      %v650 = vld [vmem:[%s4 + $0x30] sm:$0xff]
      %v651 = vld [vmem:[%s4 + $0x38] sm:$0xff]
      %v652 = vld [vmem:[%s4 + $0x40] sm:$0xff]
      %v653 = vld [vmem:[%s4 + $0x48] sm:$0xff]
      %v654 = vld [vmem:[%s4 + $0x50] sm:$0xff]
      %v655 = vld [vmem:[%s4 + $0x58] sm:$0xff]
      %v656 = vld [vmem:[%s4 + $0x60] sm:$0xff]
      %v657 = vld [vmem:[%s4 + $0x68] sm:$0xff]
      %v658 = vld [vmem:[%s4 + $0x70] sm:$0xff]
      %v659 = vld [vmem:[%s4 + $0x78] sm:$0xff]
      %660 = vmatprep.subr.mxu0 0.0
      %661 = vmatpush1.msra.mxu0 %v644
      %662 = vmatprep.subr.mxu0 0.0
      %663 = vmatpush1.msra.mxu0 %v645
      %664 = vmatprep.subr.mxu0 0.0
      %665 = vmatpush1.msra.mxu0 %v646
      %666 = vmatprep.subr.mxu0 0.0
      %667 = vmatpush1.msra.mxu0 %v647
      %668 = vmatprep.subr.mxu0 0.0
      %669 = vmatpush1.msra.mxu0 %v648
      %670 = vmatprep.subr.mxu0 0.0
      %671 = vmatpush1.msra.mxu0 %v649
      %672 = vmatprep.subr.mxu0 0.0
      %673 = vmatpush1.msra.mxu0 %v650
      %674 = vmatprep.subr.mxu0 0.0
      %675 = vmatpush1.msra.mxu0 %v651
      %676 = vmatprep.subr.mxu0 0.0
      %677 = vmatpush1.msra.mxu0 %v652
      %678 = vmatprep.subr.mxu0 0.0
      %679 = vmatpush1.msra.mxu0 %v653
      %680 = vmatprep.subr.mxu0 0.0
      %681 = vmatpush1.msra.mxu0 %v654
      %682 = vmatprep.subr.mxu0 0.0
      %683 = vmatpush1.msra.mxu0 %v655
      %684 = vmatprep.subr.mxu0 0.0
      %685 = vmatpush1.msra.mxu0 %v656
      %686 = vmatprep.subr.mxu0 0.0
      %687 = vmatpush1.msra.mxu0 %v657
      %688 = vmatprep.subr.mxu0 0.0
      %689 = vmatpush1.msra.mxu0 %v658
      %690 = vmatprep.subr.mxu0 0.0
      %691 = vmatpush1.msra.mxu0 %v659
      %692 = vmatprep.subr.mxu0 0.0
      %693 = vmatpush1.msra.mxu0 0.0
      %694 = vmatprep.subr.mxu0 0.0
      %695 = vmatpush1.msra.mxu0 0.0
      %696 = vmatprep.subr.mxu0 0.0
      %697 = vmatpush1.msra.mxu0 0.0
      %698 = vmatprep.subr.mxu0 0.0
      %699 = vmatpush1.msra.mxu0 0.0
      %700 = vmatprep.subr.mxu0 0.0
      %701 = vmatpush1.msra.mxu0 0.0
      %702 = vmatprep.subr.mxu0 0.0
      %703 = vmatpush1.msra.mxu0 0.0
      %704 = vmatprep.subr.mxu0 0.0
      %705 = vmatpush1.msra.mxu0 0.0
      %706 = vmatprep.subr.mxu0 0.0
      %707 = vmatpush1.msra.mxu0 0.0
      %708 = vmatprep.subr.mxu0 0.0
      %709 = vmatpush1.msra.mxu0 0.0
      %710 = vmatprep.subr.mxu0 0.0
      %711 = vmatpush1.msra.mxu0 0.0
      %712 = vmatprep.subr.mxu0 0.0
      %713 = vmatpush1.msra.mxu0 0.0
      %714 = vmatprep.subr.mxu0 0.0
      %715 = vmatpush1.msra.mxu0 0.0
      %716 = vmatprep.subr.mxu0 0.0
      %717 = vmatpush1.msra.mxu0 0.0
      %718 = vmatprep.subr.mxu0 0.0
      %719 = vmatpush1.msra.mxu0 0.0
      %720 = vmatprep.subr.mxu0 0.0
      %721 = vmatpush1.msra.mxu0 0.0
      %722 = vmatprep.subr.mxu0 0.0
      %723 = vmatpush1.msra.mxu0 0.0
      %724 = vmatprep.mubr.f32.mxu0 0.0
      %725 = vmatmul.mubr.f32.gmra.mrb[0].mxu0 %v629
      %v726 = vpop.f32.mrb[0].mxu0
      %v727 = vadd.f32 0.0, %v726
      %v728 = vpop.f32.mrb[0].mxu0
      %729 = vdwg.mxu0
      %v730 = vmul.f32 %v727, 2.0
      %v731 = vadd.f32 %v730, 1.0
      %732 = vmatprep.subr.mxu0 0.0
      %733 = vmatpush1.msra.mxu0 %v644
      %734 = vmatprep.subr.mxu0 0.0
      %735 = vmatpush1.msra.mxu0 %v645
      %736 = vmatprep.subr.mxu0 0.0
      %737 = vmatpush1.msra.mxu0 %v646
      %738 = vmatprep.subr.mxu0 0.0
      %739 = vmatpush1.msra.mxu0 %v647
      %740 = vmatprep.subr.mxu0 0.0
      %741 = vmatpush1.msra.mxu0 %v648
      %742 = vmatprep.subr.mxu0 0.0
      %743 = vmatpush1.msra.mxu0 %v649
      %744 = vmatprep.subr.mxu0 0.0
      %745 = vmatpush1.msra.mxu0 %v650
      %746 = vmatprep.subr.mxu0 0.0
      %747 = vmatpush1.msra.mxu0 %v651
      %748 = vmatprep.subr.mxu0 0.0
      %749 = vmatpush1.msra.mxu0 %v652
      %750 = vmatprep.subr.mxu0 0.0
      %751 = vmatpush1.msra.mxu0 %v653
      %752 = vmatprep.subr.mxu0 0.0
      %753 = vmatpush1.msra.mxu0 %v654
      %754 = vmatprep.subr.mxu0 0.0
      %755 = vmatpush1.msra.mxu0 %v655
      %756 = vmatprep.subr.mxu0 0.0
      %757 = vmatpush1.msra.mxu0 %v656
      %758 = vmatprep.subr.mxu0 0.0
      %759 = vmatpush1.msra.mxu0 %v657
      %760 = vmatprep.subr.mxu0 0.0
      %761 = vmatpush1.msra.mxu0 %v658
      %762 = vmatprep.subr.mxu0 0.0
      %763 = vmatpush1.msra.mxu0 %v659
      %764 = vmatprep.subr.mxu0 0.0
      %765 = vmatpush1.msra.mxu0 0.0
      %766 = vmatprep.subr.mxu0 0.0
      %767 = vmatpush1.msra.mxu0 0.0
      %768 = vmatprep.subr.mxu0 0.0
      %769 = vmatpush1.msra.mxu0 0.0
      %770 = vmatprep.subr.mxu0 0.0
      %771 = vmatpush1.msra.mxu0 0.0
      %772 = vmatprep.subr.mxu0 0.0
      %773 = vmatpush1.msra.mxu0 0.0
      %774 = vmatprep.subr.mxu0 0.0
      %775 = vmatpush1.msra.mxu0 0.0
      %776 = vmatprep.subr.mxu0 0.0
      %777 = vmatpush1.msra.mxu0 0.0
      %778 = vmatprep.subr.mxu0 0.0
      %779 = vmatpush1.msra.mxu0 0.0
      %780 = vmatprep.subr.mxu0 0.0
      %781 = vmatpush1.msra.mxu0 0.0
      %782 = vmatprep.subr.mxu0 0.0
      %783 = vmatpush1.msra.mxu0 0.0
      %784 = vmatprep.subr.mxu0 0.0
      %785 = vmatpush1.msra.mxu0 0.0
      %786 = vmatprep.subr.mxu0 0.0
      %787 = vmatpush1.msra.mxu0 0.0
      %788 = vmatprep.subr.mxu0 0.0
      %789 = vmatpush1.msra.mxu0 0.0
      %790 = vmatprep.subr.mxu0 0.0
      %791 = vmatpush1.msra.mxu0 0.0
      %792 = vmatprep.subr.mxu0 0.0
      %793 = vmatpush1.msra.mxu0 0.0
      %794 = vmatprep.subr.mxu0 0.0
      %795 = vmatpush1.msra.mxu0 0.0
      %796 = vmatprep.mubr.f32.mxu0 0.0
      %797 = vmatmul.mubr.f32.gmra.mrb[0].mxu0 %v643
      %v798 = vpop.f32.mrb[0].mxu0
      %v799 = vadd.f32 1.0, %v798
      %v800 = vpop.f32.mrb[0].mxu0
      %801 = vdwg.mxu0
      %v802 = vrcp.pop %v799
      %v803 = vmul.f32 %v731, %v802
      %v804 = vsub.f32 1.0, %v803
      %vm805 = vcmask 24576
      %v806 = vsel %vm805, %v804, 0.0
      %807 = vadd.xlane.f32.xlu0 %v806
      %v808 = vpop.xlane.xlu0 %807
      %v809 = vrot.slane %v808, 4
      %v810 = vadd.f32 %v808, %v809
      %v811 = vrot.slane %v810, 2
      %v812 = vadd.f32 %v810, %v811
      %v813 = vrot.slane %v812, 1
      %v814 = vadd.f32 %v812, %v813
      %s815 = vtos %v814
      %v816 = vlaneseq
      %v817 = vshrl.u32 %v816, 7
      %vm818 = vcmp.eq.s32.totalorder %v817, 0
      %v819 = vstv %s615
      %v820 = vsel %vm818, %v819, 0.0
      %vm821 = vcmp.eq.s32.totalorder %v817, 1
      %v822 = vstv %s815
      %v823 = vsel %vm821, %v822, 0.0
      %v824 = vadd.f32 %v820, %v823
      %825 = vst [vmem:[%s241] sm:$0xff] %v824
      %p826 = scmp.lt.s32.totalorder %s16, 1
      %s827 = scalar_select %p826, %s16, 1
      %s828 = smul.addr %s827, 8
      %s829 = scalar_lea.vmem %s5, %s828
      // Predicated region
      $region41: #{_device_loss.1} parent=39 // pred_check
        %p830 = pneg %p149
      $region42: #{_device_loss.1} parent=39 // pred_check_branch
        %832 = sbr.rel (%p830) target = $region44
      $region43: #{_device_loss.1} parent=39 // pred_region
        _
      $region44: #{_device_loss.1} parent=39 // pred_fallthru
        _
    $region40: #{_device_loss.1} parent=5 // pred_fallthru
      _
    %p833 = scmp.le.s32.totalorder 2, %s11
    // Predicated region
    $region45: #{_device_loss.1} parent=5 // pred_check
      %p834 = pneg %p833
    $region46: #{_device_loss.1} parent=5 // pred_check_branch
      %836 = sbr.rel (%p834) target = $region48
    $region47: #{_device_loss.1} parent=5 // pred_region
      %s837 = ssub.s32 %s11, 2
      // Predicated region
      $region49: #{_device_loss.1} parent=47 // pred_check
        %p838 = pneg %p155
      $region50: #{_device_loss.1} parent=47 // pred_check_branch
        %840 = sbr.rel (%p838) target = $region52
      $region51: #{_device_loss.1} parent=47 // pred_region
        %p841 = scmp.lt.s32.totalorder %s17, 1
        %s842 = scalar_select %p841, %s17, 1
        %s843 = smul.addr %s842, 8
        %s844 = scalar_lea.vmem %s5, %s843
      $region52: #{_device_loss.1} parent=47 // pred_fallthru
        _
    $region48: #{_device_loss.1} parent=5 // pred_fallthru
      _
  $region6: #{_device_loss.1} parent=0 // loop_footer
    %s15 = sadd.s32 1, %s11
  $region7: #{_device_loss.1} parent=0 // loop_footer_branch
    %10 = sbr.rel target = $region3
  $region8: #{_device_loss.1} parent=0 // loop_exit
    _

</llo_original>
